<compile_context>
chip_gen: v7x
topology: tpu7x:2x2x1
jax: 0.10.0
libtpu: 0.0.40
codegen_flags: <defaults>
</compile_context>

<pallas_src>
import jax
import jax.numpy as jnp
from jax.experimental import pallas as pl
from jax.experimental.pallas import tpu as pltpu


def _round_up(x, m):
    return ((x + m - 1) // m) * m


def _make_kernel(use_bf16_matmul):
    mm_dtype = jnp.bfloat16 if use_bf16_matmul else jnp.float32

    def mlp_kernel(x_ref, w1_ref, b1_ref, w2_ref, b2_ref, o_ref):
        # Linear 1 + ReLU:  (TB, 100) @ (100, 200) + (1, 200)
        h = jnp.dot(x_ref[...].astype(mm_dtype), w1_ref[...].astype(mm_dtype),
                    preferred_element_type=jnp.float32)
        h = jnp.maximum(h + b1_ref[...], 0.0)          # f32 elementwise (v5e-safe)

        # Linear 2:         (TB, 200) @ (200, 10) + (1, 10)
        logits = jnp.dot(h.astype(mm_dtype), w2_ref[...].astype(mm_dtype),
                         preferred_element_type=jnp.float32)
        logits = logits + b2_ref[...]

        # Numerically stable softmax over the last axis (10 real columns).
        # Exact divide so every row sums to 1 to f32 roundoff.
        m = jnp.max(logits, axis=-1, keepdims=True)
        e = jnp.exp(logits - m)
        denom = jnp.sum(e, axis=-1, keepdims=True)
        o_ref[...] = (e / denom).astype(o_ref.dtype)

    return mlp_kernel


def _vmem_limit_bytes(tb, d_in, d_hid, d_out):
    """Tight VMEM estimate (lane/sublane padded), clamped for v7x (32 MiB scoped)."""
    lane = lambda n: _round_up(n, 128)
    sub = lambda n: _round_up(max(n, 8), 8)
    f32 = 4
    # double-buffered streamed blocks (x, out)
    blocks = 2 * tb * (lane(d_in) + lane(d_out))
    # double-buffered resident params (tiny)
    blocks += 2 * (sub(d_in) * lane(d_hid) + 8 * lane(d_hid)
                   + sub(d_hid) * lane(d_out) + 8 * lane(d_out))
    # in-body working set: h, cast copies, e/logits, m/denom
    work = tb * (2 * lane(d_hid) + 3 * lane(d_out))
    est = (blocks + work) * f32
    return int(min(max(est + (2 << 20), 16 << 20), 32 << 20))


def simple_model_forward(x, w1, b1, w2, b2, *, block_batch=2048,
                         use_bf16_matmul=False):
    """x: (B, 100) f32 -> softmax probabilities (B, 10) f32.

    w1: (100, 200), b1: (200,), w2: (200, 10), b2: (10,)  (weights stored
    transposed vs torch.nn.Linear.weight).
    """
    B, d_in = x.shape
    d_hid = w1.shape[1]
    d_out = w2.shape[1]

    b1 = jnp.reshape(b1, (1, d_hid))
    b2 = jnp.reshape(b2, (1, d_out))

    # Batch tile: multiple of 8 (sublane).  If the whole batch fits in one
    # tile, split it so the grid has >= 2 steps where possible (keeps both
    # v7x TensorCores busy; harmless on single-TC v5e/v6e).
    tb_cap = max(8, (block_batch // 8) * 8)
    if B <= tb_cap:
        tb = max(8, _round_up(pl.cdiv(B, 2), 8))
    else:
        tb = tb_cap
    nb = pl.cdiv(B, tb)   # non-divisible grids are fine: OOB rows are masked

    out = pl.pallas_call(
        _make_kernel(use_bf16_matmul),
        out_shape=jax.ShapeDtypeStruct((B, d_out), jnp.float32),
        grid=(nb,),
        in_specs=[
            pl.BlockSpec((tb, d_in), lambda i: (i, 0)),    # x: streamed by batch tile
            pl.BlockSpec((d_in, d_hid), lambda i: (0, 0)),  # w1: VMEM-resident
            pl.BlockSpec((1, d_hid), lambda i: (0, 0)),     # b1: VMEM-resident
            pl.BlockSpec((d_hid, d_out), lambda i: (0, 0)), # w2: VMEM-resident
            pl.BlockSpec((1, d_out), lambda i: (0, 0)),     # b2: VMEM-resident
        ],
        out_specs=pl.BlockSpec((tb, d_out), lambda i: (i, 0)),
        compiler_params=pltpu.CompilerParams(
            dimension_semantics=("parallel",),              # shard batch over TCs
            vmem_limit_bytes=_vmem_limit_bytes(tb, d_in, d_hid, d_out),
        ),
    )(x, w1, b1, w2, b2)

    return out


if __name__ == "__main__":
    key = jax.random.PRNGKey(0)
    k_x, k_w1, k_b1, k_w2, k_b2 = jax.random.split(key, 5)

    B, D_IN, D_HID, D_OUT = 8, 100, 200, 10

    # Deterministic synthetic parameters (PyTorch-equivalent shapes, stored
    # transposed as (in, out)).
    x = jax.random.normal(k_x, (B, D_IN), dtype=jnp.float32)
    w1 = jax.random.normal(k_w1, (D_IN, D_HID), dtype=jnp.float32) * 0.1
    b1 = jax.random.normal(k_b1, (D_HID,), dtype=jnp.float32) * 0.1
    w2 = jax.random.normal(k_w2, (D_HID, D_OUT), dtype=jnp.float32) * 0.1
    b2 = jax.random.normal(k_b2, (D_OUT,), dtype=jnp.float32) * 0.1

    # jit the wrapper so pad-free dispatch is a single executable.
    fwd = jax.jit(simple_model_forward,
                  static_argnames=("block_batch", "use_bf16_matmul"))
    # f32 MXU operands here (tiny correctness run); set use_bf16_matmul=True on
    # v5e for large-batch throughput.
    out = fwd(x, w1, b1, w2, b2, use_bf16_matmul=False)
    jax.block_until_ready(out)

    # Sanity check against a pure-JAX reference.
    h_ref = jnp.maximum(x @ w1 + b1, 0.0)
    ref = jax.nn.softmax(h_ref @ w2 + b2, axis=-1)
    assert out.shape == (B, D_OUT)
    assert jnp.allclose(out, ref, atol=2e-3), "mismatch vs reference"
    assert jnp.allclose(jnp.sum(out, axis=-1), 1.0, atol=1e-3), "rows must sum to 1"

    print("KERNEL_OK")
</pallas_src>

<mosaic_0001>
module attributes {stable_mosaic.version = 11 : i64} {
  func.func @mlp_kernel(%arg0: i32, %arg1: memref<8x100xf32, #tpu.memory_space<vmem>>, %arg2: memref<100x200xf32, #tpu.memory_space<vmem>>, %arg3: memref<1x200xf32, #tpu.memory_space<vmem>>, %arg4: memref<200x10xf32, #tpu.memory_space<vmem>>, %arg5: memref<1x10xf32, #tpu.memory_space<vmem>>, %arg6: memref<8x10xf32, #tpu.memory_space<vmem>>) attributes {dimension_semantics = [#tpu.dimension_semantics<parallel>], iteration_bounds = array<i64: 1>, scalar_prefetch = 0 : i64, scratch_operands = 0 : i64, tpu.core_type = #tpu.core_type<tc>, window_params = [{transform_indices = @transform_0, window_bounds = array<i64: 8, 100>}, {pipeline_mode = #tpu.pipeline_mode<synchronous>, transform_indices = @transform_1, window_bounds = array<i64: 100, 200>}, {pipeline_mode = #tpu.pipeline_mode<synchronous>, transform_indices = @transform_2, window_bounds = array<i64: 1, 200>}, {pipeline_mode = #tpu.pipeline_mode<synchronous>, transform_indices = @transform_3, window_bounds = array<i64: 200, 10>}, {pipeline_mode = #tpu.pipeline_mode<synchronous>, transform_indices = @transform_4, window_bounds = array<i64: 1, 10>}, {transform_indices = @transform_5, window_bounds = array<i64: 8, 10>}]} {
    %c0 = arith.constant 0 : index
    %c0_0 = arith.constant 0 : index
    %0 = vector.load %arg1[%c0, %c0_0] : memref<8x100xf32, #tpu.memory_space<vmem>>, vector<8x100xf32>
    %c0_1 = arith.constant 0 : index
    %c0_2 = arith.constant 0 : index
    %1 = vector.load %arg2[%c0_1, %c0_2] : memref<100x200xf32, #tpu.memory_space<vmem>>, vector<100x200xf32>
    %cst = arith.constant dense<0.000000e+00> : vector<8x200xf32>
    %2 = tpu.matmul %0, %1, %cst {dimension_numbers = #tpu.dot_dimension_numbers<[1], [0], [0], [1], [0, 0, 1, 1], [], []>} : vector<8x100xf32>, vector<100x200xf32>, vector<8x200xf32> -> vector<8x200xf32>
    %c0_3 = arith.constant 0 : index
    %c0_4 = arith.constant 0 : index
    %3 = vector.load %arg3[%c0_3, %c0_4] : memref<1x200xf32, #tpu.memory_space<vmem>>, vector<1x200xf32>
    %4 = vector.broadcast %3 : vector<1x200xf32> to vector<8x200xf32>
    %5 = arith.addf %2, %4 : vector<8x200xf32>
    %cst_5 = arith.constant 0.000000e+00 : f32
    %6 = vector.broadcast %cst_5 : f32 to vector<8x200xf32>
    %7 = arith.maximumf %5, %6 : vector<8x200xf32>
    %c0_6 = arith.constant 0 : index
    %c0_7 = arith.constant 0 : index
    %8 = vector.load %arg4[%c0_6, %c0_7] : memref<200x10xf32, #tpu.memory_space<vmem>>, vector<200x10xf32>
    %cst_8 = arith.constant dense<0.000000e+00> : vector<8x10xf32>
    %9 = tpu.matmul %7, %8, %cst_8 {dimension_numbers = #tpu.dot_dimension_numbers<[1], [0], [0], [1], [0, 0, 1, 1], [], []>} : vector<8x200xf32>, vector<200x10xf32>, vector<8x10xf32> -> vector<8x10xf32>
    %c0_9 = arith.constant 0 : index
    %c0_10 = arith.constant 0 : index
    %10 = vector.load %arg5[%c0_9, %c0_10] : memref<1x10xf32, #tpu.memory_space<vmem>>, vector<1x10xf32>
    %11 = vector.broadcast %10 : vector<1x10xf32> to vector<8x10xf32>
    %12 = arith.addf %9, %11 : vector<8x10xf32>
    %cst_11 = arith.constant dense<0xFF800000> : vector<8xf32>
    %13 = vector.multi_reduction <maximumf>, %12, %cst_11 [1] : vector<8x10xf32> to vector<8xf32>
    %14 = vector.shape_cast %13 : vector<8xf32> to vector<8x1xf32>
    %15 = vector.broadcast %14 : vector<8x1xf32> to vector<8x10xf32>
    %16 = arith.subf %12, %15 : vector<8x10xf32>
    %17 = math.exp %16 : vector<8x10xf32>
    %cst_12 = arith.constant dense<0.000000e+00> : vector<8xf32>
    %18 = vector.multi_reduction <add>, %17, %cst_12 [1] : vector<8x10xf32> to vector<8xf32>
    %19 = vector.shape_cast %18 : vector<8xf32> to vector<8x1xf32>
    %20 = vector.broadcast %19 : vector<8x1xf32> to vector<8x10xf32>
    %21 = arith.divf %17, %20 : vector<8x10xf32>
    %c0_13 = arith.constant 0 : index
    %c0_14 = arith.constant 0 : index
    %22 = vector.load %arg6[%c0_13, %c0_14] : memref<8x10xf32, #tpu.memory_space<vmem>>, vector<8x10xf32>
    tpu.vector_store %arg6[%c0_13, %c0_14], %21 {strides = array<i32>} : memref<8x10xf32, #tpu.memory_space<vmem>>, vector<8x10xf32>,
    return
  }
  func.func @transform_0(%arg0: i32) -> (i32, i32) {
    %c0_i32 = arith.constant 0 : i32
    %c0_i32_0 = arith.constant 0 : i32
    return %arg0, %c0_i32 : i32, i32
  }
  func.func @transform_1(%arg0: i32) -> (i32, i32) {
    %c0_i32 = arith.constant 0 : i32
    %c0_i32_0 = arith.constant 0 : i32
    %c0_i32_1 = arith.constant 0 : i32
    return %c0_i32, %c0_i32_0 : i32, i32
  }
  func.func @transform_2(%arg0: i32) -> (i32, i32) {
    %c0_i32 = arith.constant 0 : i32
    %c0_i32_0 = arith.constant 0 : i32
    %c0_i32_1 = arith.constant 0 : i32
    return %c0_i32, %c0_i32_0 : i32, i32
  }
  func.func @transform_3(%arg0: i32) -> (i32, i32) {
    %c0_i32 = arith.constant 0 : i32
    %c0_i32_0 = arith.constant 0 : i32
    %c0_i32_1 = arith.constant 0 : i32
    return %c0_i32, %c0_i32_0 : i32, i32
  }
  func.func @transform_4(%arg0: i32) -> (i32, i32) {
    %c0_i32 = arith.constant 0 : i32
    %c0_i32_0 = arith.constant 0 : i32
    %c0_i32_1 = arith.constant 0 : i32
    return %c0_i32, %c0_i32_0 : i32, i32
  }
  func.func @transform_5(%arg0: i32) -> (i32, i32) {
    %c0_i32 = arith.constant 0 : i32
    %c0_i32_0 = arith.constant 0 : i32
    return %arg0, %c0_i32 : i32, i32
  }
}

</mosaic_0001>

<llo_original>
// kernel: simple_model_forward.1
$region0: #{simple_model_forward.1}
  #allocation0 [shape = 'u32[]', space=smem, size = 0x4, offset = 0x4, fixed_abs, tag = 'smem constant byte address 0x4 - core index']
  #allocation1 [shape = 'u32[144,128]{1,0:T(1,128)}', space=vmem, size = 0x12000, scoped, tag = 'internal scratch']
  %s0 = inlined_call_operand.vmem [shape: f32[8,100], index: 0, kind: input, shape index: {}]
  %s1 = inlined_call_operand.vmem [shape: f32[100,200], index: 1, kind: input, shape index: {}]
  %s2 = inlined_call_operand.vmem [shape: f32[1,200], index: 2, kind: input, shape index: {}]
  %s3 = inlined_call_operand.vmem [shape: f32[200,10], index: 3, kind: input, shape index: {}]
  %s4 = inlined_call_operand.vmem [shape: f32[1,10], index: 4, kind: input, shape index: {}]
  %s5 = inlined_call_operand.hbm [shape: f32[8,10], index: 5, kind: output, shape index: {}]
  %s6 = sld [smem:[#allocation0]]
  $region30: #{simple_model_forward.1} parent=0
    _
  %s8 = ssub.s32 1, %s6
  %s9 = scalar_select 0, %s8, %s6
  $region1: #{simple_model_forward.1} parent=0
    #allocation2 [shape = 'u8[4096]{0}', space=vmem, size = 0x1000, scoped, tag = 'output window, operand 0, single buffered']
    #allocation3 [shape = 's32[1]{0}', space=sflag, size = 0x4, scoped, tag = 'scoped memory for simple_model_forward.1']
    %10 = vsyncpa [#allocation3], 0
    // Predicated region
    $region2: #{simple_model_forward.1} parent=1 // pred_check
      _
    $region3: #{simple_model_forward.1} parent=1 // pred_check_branch
      %12 = sbr.rel (0) target = $region5
    $region4: #{simple_model_forward.1} parent=1 // pred_region
      _
    $region5: #{simple_model_forward.1} parent=1 // pred_fallthru
      _
    // Predicated region
    $region6: #{simple_model_forward.1} parent=1 // pred_check
      _
    $region7: #{simple_model_forward.1} parent=1 // pred_check_branch
      %14 = sbr.rel (0) target = $region9
    $region8: #{simple_model_forward.1} parent=1 // pred_region
      _
    $region9: #{simple_model_forward.1} parent=1 // pred_fallthru
      _
    // Predicated region
    $region10: #{simple_model_forward.1} parent=1 // pred_check
      _
    $region11: #{simple_model_forward.1} parent=1 // pred_check_branch
      %16 = sbr.rel (0) target = $region13
    $region12: #{simple_model_forward.1} parent=1 // pred_region
      _
    $region13: #{simple_model_forward.1} parent=1 // pred_fallthru
      _
    // Predicated region
    $region14: #{simple_model_forward.1} parent=1 // pred_check
      _
    $region15: #{simple_model_forward.1} parent=1 // pred_check_branch
      %18 = sbr.rel (0) target = $region17
    $region16: #{simple_model_forward.1} parent=1 // pred_region
      _
    $region17: #{simple_model_forward.1} parent=1 // pred_fallthru
      _
    // Predicated region
    $region18: #{simple_model_forward.1} parent=1 // pred_check
      _
    $region19: #{simple_model_forward.1} parent=1 // pred_check_branch
      %20 = sbr.rel (0) target = $region21
    $region20: #{simple_model_forward.1} parent=1 // pred_region
      _
    $region21: #{simple_model_forward.1} parent=1 // pred_fallthru
      _
    %v21 = vld [vmem:[%s0] sm:$0xff]
    %v22 = vld [vmem:[%s1] sm:$0xff]
    %v23 = vld [vmem:[%s1 + $0x8] sm:$0xff]
    %v24 = vld [vmem:[%s1 + $0x10] sm:$0xff]
    %v25 = vld [vmem:[%s1 + $0x18] sm:$0xff]
    %v26 = vld [vmem:[%s1 + $0x20] sm:$0xff]
    %v27 = vld [vmem:[%s1 + $0x28] sm:$0xff]
    %v28 = vld [vmem:[%s1 + $0x30] sm:$0xff]
    %v29 = vld [vmem:[%s1 + $0x38] sm:$0xff]
    %v30 = vld [vmem:[%s1 + $0x40] sm:$0xff]
    %v31 = vld [vmem:[%s1 + $0x48] sm:$0xff]
    %v32 = vld [vmem:[%s1 + $0x50] sm:$0xff]
    %v33 = vld [vmem:[%s1 + $0x58] sm:$0xff]
    %v34 = vld [vmem:[%s1 + $0x60] sm:$0xff]
    %v35 = vld [vmem:[%s1 + $0x68] sm:$0xff]
    %v36 = vld [vmem:[%s1 + $0x70] sm:$0xff]
    %v37 = vld [vmem:[%s1 + $0x78] sm:$0xff]
    %v38 = vld [vmem:[%s1 + $0x80] sm:$0xff]
    %v39 = vld [vmem:[%s1 + $0x88] sm:$0xff]
    %v40 = vld [vmem:[%s1 + $0x90] sm:$0xff]
    %v41 = vld [vmem:[%s1 + $0x98] sm:$0xff]
    %v42 = vld [vmem:[%s1 + $0xa0] sm:$0xff]
    %v43 = vld [vmem:[%s1 + $0xa8] sm:$0xff]
    %v44 = vld [vmem:[%s1 + $0xb0] sm:$0xff]
    %v45 = vld [vmem:[%s1 + $0xb8] sm:$0xff]
    %v46 = vld [vmem:[%s1 + $0xc0] sm:$0xf]
    %v47 = vld [vmem:[%s1 + $0xc8] sm:$0xf]
    %v48 = vld [vmem:[%s2] sm:$0x3]
    %v50 = vlaneseq
    %v51 = vshrl.u32 %v50, 7
    %v52 = vsub.s32 0, %v51
    %v53 = vrot.slane %v48, %v52
    %v54 = vlaneseq
    %v55 = vshrl.u32 %v54, 7
    %v56 = vsub.s32 1, %v55
    %v57 = vrot.slane %v48, %v56
    %vm60 = vcmask 818176
    %v62 = vsel %vm60, %v21, 0
    %vm64 = vcmask 1043456
    %v66 = vsel %vm64, %v46, 0
    %v69 = vsel %vm64, %v47, 0
    %71 = vmatprep.subr.mxu0 %v23
    %72 = vmatpush1.msra.mxu0 %v22
    %73 = vmatprep.subr.mxu0 %v25
    %74 = vmatpush1.msra.mxu0 %v24
    %75 = vmatprep.subr.mxu0 %v27
    %76 = vmatpush1.msra.mxu0 %v26
    %77 = vmatprep.subr.mxu0 %v29
    %78 = vmatpush1.msra.mxu0 %v28
    %79 = vmatprep.subr.mxu0 %v31
    %80 = vmatpush1.msra.mxu0 %v30
    %81 = vmatprep.subr.mxu0 %v33
    %82 = vmatpush1.msra.mxu0 %v32
    %83 = vmatprep.subr.mxu0 %v35
    %84 = vmatpush1.msra.mxu0 %v34
    %85 = vmatprep.subr.mxu0 %v37
    %86 = vmatpush1.msra.mxu0 %v36
    %87 = vmatprep.subr.mxu0 %v39
    %88 = vmatpush1.msra.mxu0 %v38
    %89 = vmatprep.subr.mxu0 %v41
    %90 = vmatpush1.msra.mxu0 %v40
    %91 = vmatprep.subr.mxu0 %v43
    %92 = vmatpush1.msra.mxu0 %v42
    %93 = vmatprep.subr.mxu0 %v45
    %94 = vmatpush1.msra.mxu0 %v44
    %95 = vmatprep.subr.mxu0 %v69
    %96 = vmatpush1.msra.mxu0 %v66
    %97 = vmatprep.subr.mxu0 0.0
    %98 = vmatpush1.msra.mxu0 0.0
    %99 = vmatprep.subr.mxu0 0.0
    %100 = vmatpush1.msra.mxu0 0.0
    %101 = vmatprep.subr.mxu0 0.0
    %102 = vmatpush1.msra.mxu0 0.0
    %103 = vmatprep.subr.mxu0 0.0
    %104 = vmatpush1.msra.mxu0 0.0
    %105 = vmatprep.subr.mxu0 0.0
    %106 = vmatpush1.msra.mxu0 0.0
    %107 = vmatprep.subr.mxu0 0.0
    %108 = vmatpush1.msra.mxu0 0.0
    %109 = vmatprep.subr.mxu0 0.0
    %110 = vmatpush1.msra.mxu0 0.0
    %111 = vmatprep.subr.mxu0 0.0
    %112 = vmatpush1.msra.mxu0 0.0
    %113 = vmatprep.subr.mxu0 0.0
    %114 = vmatpush1.msra.mxu0 0.0
    %115 = vmatprep.subr.mxu0 0.0
    %116 = vmatpush1.msra.mxu0 0.0
    %117 = vmatprep.subr.mxu0 0.0
    %118 = vmatpush1.msra.mxu0 0.0
    %119 = vmatprep.subr.mxu0 0.0
    %120 = vmatpush1.msra.mxu0 0.0
    %121 = vmatprep.subr.mxu0 0.0
    %122 = vmatpush1.msra.mxu0 0.0
    %123 = vmatprep.subr.mxu0 0.0
    %124 = vmatpush1.msra.mxu0 0.0
    %125 = vmatprep.subr.mxu0 0.0
    %126 = vmatpush1.msra.mxu0 0.0
    %127 = vmatprep.subr.mxu0 0.0
    %128 = vmatpush1.msra.mxu0 0.0
    %129 = vmatprep.subr.mxu0 0.0
    %130 = vmatpush1.msra.mxu0 0.0
    %131 = vmatprep.subr.mxu0 0.0
    %132 = vmatpush1.msra.mxu0 0.0
    %133 = vmatprep.subr.mxu0 0.0
    %134 = vmatpush1.msra.mxu0 0.0
    %135 = vmatprep.mubr.f32.mxu0 0.0
    %136 = vmatmul.mubr.f32.gmra.mrb[0].mxu0 %v62
    %v137 = vpop.f32.mrb[0].mxu0
    %v138 = vadd.f32 %v53, %v137
    %v139 = vpop.f32.mrb[0].mxu0
    %v140 = vadd.f32 %v57, %v139
    %141 = vdwg.mxu0
    %v142 = vmax.f32 %v138, 0.0
    %v143 = vmax.f32 %v140, 0.0
    %v144 = vld [vmem:[%s3] sm:$0xff]
    %v145 = vld [vmem:[%s3 + $0x8] sm:$0xff]
    %v146 = vld [vmem:[%s3 + $0x10] sm:$0xff]
    %v147 = vld [vmem:[%s3 + $0x18] sm:$0xff]
    %v148 = vld [vmem:[%s3 + $0x20] sm:$0xff]
    %v149 = vld [vmem:[%s3 + $0x28] sm:$0xff]
    %v150 = vld [vmem:[%s3 + $0x30] sm:$0xff]
    %v151 = vld [vmem:[%s3 + $0x38] sm:$0xff]
    %v152 = vld [vmem:[%s3 + $0x40] sm:$0xff]
    %v153 = vld [vmem:[%s3 + $0x48] sm:$0xff]
    %v154 = vld [vmem:[%s3 + $0x50] sm:$0xff]
    %v155 = vld [vmem:[%s3 + $0x58] sm:$0xff]
    %v156 = vld [vmem:[%s3 + $0x60] sm:$0xff]
    %v157 = vld [vmem:[%s3 + $0x68] sm:$0xff]
    %v158 = vld [vmem:[%s3 + $0x70] sm:$0xff]
    %v159 = vld [vmem:[%s3 + $0x78] sm:$0xff]
    %v160 = vld [vmem:[%s3 + $0x80] sm:$0xff]
    %v161 = vld [vmem:[%s3 + $0x88] sm:$0xff]
    %v162 = vld [vmem:[%s3 + $0x90] sm:$0xff]
    %v163 = vld [vmem:[%s3 + $0x98] sm:$0xff]
    %v164 = vld [vmem:[%s3 + $0xa0] sm:$0xff]
    %v165 = vld [vmem:[%s3 + $0xa8] sm:$0xff]
    %v166 = vld [vmem:[%s3 + $0xb0] sm:$0xff]
    %v167 = vld [vmem:[%s3 + $0xb8] sm:$0xff]
    %v168 = vld [vmem:[%s3 + $0xc0] sm:$0xff]
    %v169 = vld [vmem:[%s4] sm:$0x1]
    %v171 = vlaneseq
    %v172 = vshrl.u32 %v171, 7
    %v173 = vsub.s32 0, %v172
    %v174 = vrot.slane %v169, %v173
    %vm176 = vcmask 588800
    %v178 = vsel %vm176, %v143, 0
    %180 = vmatprep.subr.mxu0 0.0
    %181 = vmatpush1.msra.mxu0 %v144
    %182 = vmatprep.subr.mxu0 0.0
    %183 = vmatpush1.msra.mxu0 %v145
    %184 = vmatprep.subr.mxu0 0.0
    %185 = vmatpush1.msra.mxu0 %v146
    %186 = vmatprep.subr.mxu0 0.0
    %187 = vmatpush1.msra.mxu0 %v147
    %188 = vmatprep.subr.mxu0 0.0
    %189 = vmatpush1.msra.mxu0 %v148
    %190 = vmatprep.subr.mxu0 0.0
    %191 = vmatpush1.msra.mxu0 %v149
    %192 = vmatprep.subr.mxu0 0.0
    %193 = vmatpush1.msra.mxu0 %v150
    %194 = vmatprep.subr.mxu0 0.0
    %195 = vmatpush1.msra.mxu0 %v151
    %196 = vmatprep.subr.mxu0 0.0
    %197 = vmatpush1.msra.mxu0 %v152
    %198 = vmatprep.subr.mxu0 0.0
    %199 = vmatpush1.msra.mxu0 %v153
    %200 = vmatprep.subr.mxu0 0.0
    %201 = vmatpush1.msra.mxu0 %v154
    %202 = vmatprep.subr.mxu0 0.0
    %203 = vmatpush1.msra.mxu0 %v155
    %204 = vmatprep.subr.mxu0 0.0
    %205 = vmatpush1.msra.mxu0 %v156
    %206 = vmatprep.subr.mxu0 0.0
    %207 = vmatpush1.msra.mxu0 %v157
    %208 = vmatprep.subr.mxu0 0.0
    %209 = vmatpush1.msra.mxu0 %v158
    %210 = vmatprep.subr.mxu0 0.0
    %211 = vmatpush1.msra.mxu0 %v159
    %212 = vmatprep.subr.mxu0 0.0
    %213 = vmatpush1.msra.mxu0 %v160
    %214 = vmatprep.subr.mxu0 0.0
    %215 = vmatpush1.msra.mxu0 %v161
    %216 = vmatprep.subr.mxu0 0.0
    %217 = vmatpush1.msra.mxu0 %v162
    %218 = vmatprep.subr.mxu0 0.0
    %219 = vmatpush1.msra.mxu0 %v163
    %220 = vmatprep.subr.mxu0 0.0
    %221 = vmatpush1.msra.mxu0 %v164
    %222 = vmatprep.subr.mxu0 0.0
    %223 = vmatpush1.msra.mxu0 %v165
    %224 = vmatprep.subr.mxu0 0.0
    %225 = vmatpush1.msra.mxu0 %v166
    %226 = vmatprep.subr.mxu0 0.0
    %227 = vmatpush1.msra.mxu0 %v167
    %228 = vmatprep.subr.mxu0 0.0
    %229 = vmatpush1.msra.mxu0 %v168
    %230 = vmatprep.subr.mxu0 0.0
    %231 = vmatpush1.msra.mxu0 0.0
    %232 = vmatprep.subr.mxu0 0.0
    %233 = vmatpush1.msra.mxu0 0.0
    %234 = vmatprep.subr.mxu0 0.0
    %235 = vmatpush1.msra.mxu0 0.0
    %236 = vmatprep.subr.mxu0 0.0
    %237 = vmatpush1.msra.mxu0 0.0
    %238 = vmatprep.subr.mxu0 0.0
    %239 = vmatpush1.msra.mxu0 0.0
    %240 = vmatprep.subr.mxu0 0.0
    %241 = vmatpush1.msra.mxu0 0.0
    %242 = vmatprep.subr.mxu0 0.0
    %243 = vmatpush1.msra.mxu0 0.0
    %244 = vmatprep.mubr.f32.mxu0 %v178
    %245 = vmatmul.mubr.f32.gmra.mrb[0].mxu0 %v142
    %v246 = vpop.f32.mrb[0].mxu0
    %v247 = vadd.f32 %v174, %v246
    %v248 = vpop.f32.mrb[0].mxu0
    %249 = vdwg.mxu0
    %vm250 = vcmask 80896
    %v251 = vsel %vm250, %v247, -inf
    %252 = vmax.xlane.f32.xlu0 %v251
    %v253 = vpop.xlane.xlu0 %252
    %v254 = vsub.f32 %v247, %v253
    %v255 = vmul.f32 %v254, 1.442695
    %v256 = vpow.pop %v255
    %v257 = vsel %vm250, %v256, 0.0
    %258 = vadd.xlane.f32.xlu0 %v257
    %v259 = vpop.xlane.xlu0 %258
    %v260 = vrcp.pop %v259
    %v261 = vmul.f32 %v256, %v260
    %262 = vst.msk [vmem:[#allocation2] sm:$0xff] %vm250, %v261
    // Predicated region
    $region22: #{simple_model_forward.1} parent=1 // pred_check
      _
    $region23: #{simple_model_forward.1} parent=1 // pred_check_branch
      %264 = sbr.rel (0) target = $region25
    $region24: #{simple_model_forward.1} parent=1 // pred_region
      %s266 = ssub.s32 128, 128
      %267 = vsyncadd [#allocation3], %s266
      %s269 = sshll.u32 [#allocation2], 4
      %s270 = int_to_ptr.vmem [resolvable:$true] %s269
      %272 = dma.vmem_to_hbm [thread:$0]  %s270, 128, %s5, [#allocation3]
    $region25: #{simple_model_forward.1} parent=1 // pred_fallthru
      _
    // Predicated region
    $region26: #{simple_model_forward.1} parent=1 // pred_check
      _
    $region27: #{simple_model_forward.1} parent=1 // pred_check_branch
      %274 = sbr.rel (0) target = $region29
    $region28: #{simple_model_forward.1} parent=1 // pred_region
      %275 = dma.done [#allocation3], 128
    $region29: #{simple_model_forward.1} parent=1 // pred_fallthru
      _
    %276 = vsyncpa [#allocation3], 1

</llo_original>
